<compile_context>
chip_gen: v7x
topology: tpu7x:2x2x1
jax: 0.10.0
libtpu: 0.0.40
codegen_flags: <defaults>
</compile_context>

<pallas_src>
import functools

import jax
import jax.numpy as jnp
from jax import lax
from jax.experimental import pallas as pl
from jax.experimental.pallas import tpu as pltpu


def _normal_dist_decoder_kernel(x_ref, w_ref, b_ref, out_ref, *, latentD):
    """Single fused pass: out = x @ W + b; softplus on the logvar lanes only."""
    x = x_ref[...]

    out = jnp.dot(x, w_ref[...], preferred_element_type=jnp.float32) + b_ref[...]

    # PyTorch F.softplus (beta=1, threshold=20): x > 20 -> x ; else log1p(exp(x)).
    safe = jnp.minimum(out, 20.0)
    sp = jnp.where(out > 20.0, out, jnp.log1p(jnp.exp(safe)))

    # Apply softplus only on columns [latentD, 2*latentD) (the logvar half);
    # keep the mu half and the zero padding untouched. One lane-dense store.
    lane = lax.broadcasted_iota(jnp.int32, out.shape, 1)
    is_logvar = (lane >= latentD) & (lane < 2 * latentD)
    out_ref[...] = jnp.where(is_logvar, sp, out).astype(out_ref.dtype)


def normal_dist_decoder(x, w_mu, b_mu, w_logvar, b_logvar, *, block_b=512):
    """Pallas TPU NormalDistDecoder.

    Args:
      x:        [B, num_feat_in] float32
      w_mu:     [num_feat_in, latentD] float32 (transposed vs. torch Linear.weight)
      b_mu:     [latentD] float32
      w_logvar: [num_feat_in, latentD] float32
      b_logvar: [latentD] float32

    Returns:
      (loc, scale): each [B, latentD] float32 — parameters of the Normal dist.
    """
    B, F = x.shape
    latentD = w_mu.shape[1]
    N = 2 * latentD
    N_pad = pl.cdiv(N, 128) * 128  # lane-dense output slab width

    # Fuse + pad weights/biases (tiny one-off prep in the wrapper).
    w = jnp.zeros((F, N_pad), jnp.float32)
    w = w.at[:, :latentD].set(w_mu).at[:, latentD:N].set(w_logvar)
    b = jnp.zeros((1, N_pad), jnp.float32)
    b = b.at[:, :latentD].set(b_mu.reshape(1, latentD))
    b = b.at[:, latentD:N].set(b_logvar.reshape(1, latentD))

    # Batch tiling: whole batch if it is small, otherwise pipeline TB-row tiles.
    if B <= block_b:
        TB, B_pad = B, B
        xp = x
    else:
        TB = block_b  # multiple of 8 -> valid sublane tiling
        B_pad = pl.cdiv(B, TB) * TB
        xp = jnp.pad(x, ((0, B_pad - B), (0, 0))) if B_pad != B else x

    grid = (B_pad // TB,)

    cost = pl.CostEstimate(
        flops=2 * B_pad * F * N_pad,
        transcendentals=B_pad * N_pad,
        bytes_accessed=4 * (B_pad * F + F * N_pad + N_pad + B_pad * N_pad),
    )

    out_full = pl.pallas_call(
        functools.partial(_normal_dist_decoder_kernel, latentD=latentD),
        out_shape=jax.ShapeDtypeStruct((B_pad, N_pad), jnp.float32),
        grid=grid,
        in_specs=[
            pl.BlockSpec((TB, F), lambda i: (i, 0)),       # x tile, pipelined
            pl.BlockSpec((F, N_pad), lambda i: (0, 0)),    # fused weights, resident
            pl.BlockSpec((1, N_pad), lambda i: (0, 0)),    # fused biases, resident
        ],
        out_specs=pl.BlockSpec((TB, N_pad), lambda i: (i, 0)),
        compiler_params=pltpu.CompilerParams(
            dimension_semantics=("parallel",),             # megacore shard on v7x
        ),
        cost_estimate=cost,
    )(xp, w, b)

    loc = out_full[:B, :latentD]
    scale = out_full[:B, latentD:N]
    return loc, scale


def _reference(x, w_mu, b_mu, w_logvar, b_logvar):
    mu = x @ w_mu + b_mu
    lv = x @ w_logvar + b_logvar
    scale = jnp.where(lv > 20.0, lv, jnp.log1p(jnp.exp(jnp.minimum(lv, 20.0))))
    return mu, scale


if __name__ == "__main__":
    # Small shapes consistent with the module: batch=8, num_feat_in=32, latentD=16.
    B, num_feat_in, latentD = 8, 32, 16

    key = jax.random.PRNGKey(0)
    kx, kwm, kbm, kwl, kbl = jax.random.split(key, 5)

    x = jax.random.normal(kx, (B, num_feat_in), dtype=jnp.float32)
    # Deterministic synthetic parameters (same role/shapes as nn.Linear weights).
    w_mu = jax.random.normal(kwm, (num_feat_in, latentD), dtype=jnp.float32) * 0.1
    b_mu = jax.random.normal(kbm, (latentD,), dtype=jnp.float32) * 0.1
    w_logvar = jax.random.normal(kwl, (num_feat_in, latentD), dtype=jnp.float32) * 0.1
    b_logvar = jax.random.normal(kbl, (latentD,), dtype=jnp.float32) * 0.1

    loc, scale = normal_dist_decoder(x, w_mu, b_mu, w_logvar, b_logvar)
    jax.block_until_ready((loc, scale))

    ref_loc, ref_scale = _reference(x, w_mu, b_mu, w_logvar, b_logvar)
    assert loc.shape == (B, latentD) and scale.shape == (B, latentD)
    assert jnp.allclose(loc, ref_loc, atol=1e-5, rtol=1e-5)
    assert jnp.allclose(scale, ref_scale, atol=1e-5, rtol=1e-5)
    assert bool(jnp.all(scale > 0.0))  # valid Normal scale

    # Exercise the gridded (multi-tile, padded-batch) path as well.
    B2 = 1030
    x2 = jax.random.normal(kx, (B2, num_feat_in), dtype=jnp.float32)
    loc2, scale2 = normal_dist_decoder(x2, w_mu, b_mu, w_logvar, b_logvar)
    jax.block_until_ready((loc2, scale2))
    r_loc2, r_scale2 = _reference(x2, w_mu, b_mu, w_logvar, b_logvar)
    assert jnp.allclose(loc2, r_loc2, atol=1e-4, rtol=1e-5)
    assert jnp.allclose(scale2, r_scale2, atol=1e-4, rtol=1e-5)

    print("KERNEL_OK")
</pallas_src>

<mosaic_0001>
module attributes {stable_mosaic.version = 11 : i64} {
  func.func @_normal_dist_decoder_kernel(%arg0: i32, %arg1: memref<8x32xf32, #tpu.memory_space<vmem>>, %arg2: memref<32x128xf32, #tpu.memory_space<vmem>>, %arg3: memref<1x128xf32, #tpu.memory_space<vmem>>, %arg4: memref<8x128xf32, #tpu.memory_space<vmem>>) attributes {dimension_semantics = [#tpu.dimension_semantics<parallel>], iteration_bounds = array<i64: 1>, scalar_prefetch = 0 : i64, scratch_operands = 0 : i64, tpu.core_type = #tpu.core_type<tc>, window_params = [{transform_indices = @transform_0, window_bounds = array<i64: 8, 32>}, {pipeline_mode = #tpu.pipeline_mode<synchronous>, transform_indices = @transform_1, window_bounds = array<i64: 32, 128>}, {pipeline_mode = #tpu.pipeline_mode<synchronous>, transform_indices = @transform_2, window_bounds = array<i64: 1, 128>}, {transform_indices = @transform_3, window_bounds = array<i64: 8, 128>}]} {
    %c0 = arith.constant 0 : index
    %c0_0 = arith.constant 0 : index
    %0 = vector.load %arg1[%c0, %c0_0] : memref<8x32xf32, #tpu.memory_space<vmem>>, vector<8x32xf32>
    %c0_1 = arith.constant 0 : index
    %c0_2 = arith.constant 0 : index
    %1 = vector.load %arg2[%c0_1, %c0_2] : memref<32x128xf32, #tpu.memory_space<vmem>>, vector<32x128xf32>
    %cst = arith.constant dense<0.000000e+00> : vector<8x128xf32>
    %2 = tpu.matmul %0, %1, %cst {dimension_numbers = #tpu.dot_dimension_numbers<[1], [0], [0], [1], [0, 0, 1, 1], [], []>} : vector<8x32xf32>, vector<32x128xf32>, vector<8x128xf32> -> vector<8x128xf32>
    %c0_3 = arith.constant 0 : index
    %c0_4 = arith.constant 0 : index
    %3 = vector.load %arg3[%c0_3, %c0_4] : memref<1x128xf32, #tpu.memory_space<vmem>>, vector<1x128xf32>
    %4 = vector.broadcast %3 : vector<1x128xf32> to vector<8x128xf32>
    %5 = arith.addf %2, %4 : vector<8x128xf32>
    %cst_5 = arith.constant 2.000000e+01 : f32
    %6 = vector.broadcast %cst_5 : f32 to vector<8x128xf32>
    %7 = arith.minimumf %5, %6 : vector<8x128xf32>
    %cst_6 = arith.constant 2.000000e+01 : f32
    %8 = vector.broadcast %cst_6 : f32 to vector<8x128xf32>
    %9 = arith.cmpf ogt, %5, %8 : vector<8x128xf32>
    %10 = math.exp %7 : vector<8x128xf32>
    %11 = math.log1p %10 : vector<8x128xf32>
    %12 = arith.select %9, %5, %11 : vector<8x128xi1>, vector<8x128xf32>
    %13 = tpu.iota {dimensions = array<i32: 1>} : vector<8x128xi32>
    %c16_i32 = arith.constant 16 : i32
    %14 = vector.broadcast %c16_i32 : i32 to vector<8x128xi32>
    %15 = arith.cmpi sge, %13, %14 : vector<8x128xi32>
    %c32_i32 = arith.constant 32 : i32
    %16 = vector.broadcast %c32_i32 : i32 to vector<8x128xi32>
    %17 = arith.cmpi slt, %13, %16 : vector<8x128xi32>
    %18 = arith.andi %15, %17 : vector<8x128xi1>
    %19 = arith.select %18, %12, %5 : vector<8x128xi1>, vector<8x128xf32>
    %c0_7 = arith.constant 0 : index
    %c0_8 = arith.constant 0 : index
    %20 = vector.load %arg4[%c0_7, %c0_8] : memref<8x128xf32, #tpu.memory_space<vmem>>, vector<8x128xf32>
    tpu.vector_store %arg4[%c0_7, %c0_8], %19 {strides = array<i32>} : memref<8x128xf32, #tpu.memory_space<vmem>>, vector<8x128xf32>,
    return
  }
  func.func @transform_0(%arg0: i32) -> (i32, i32) {
    %c0_i32 = arith.constant 0 : i32
    %c0_i32_0 = arith.constant 0 : i32
    return %arg0, %c0_i32 : i32, i32
  }
  func.func @transform_1(%arg0: i32) -> (i32, i32) {
    %c0_i32 = arith.constant 0 : i32
    %c0_i32_0 = arith.constant 0 : i32
    %c0_i32_1 = arith.constant 0 : i32
    return %c0_i32, %c0_i32_0 : i32, i32
  }
  func.func @transform_2(%arg0: i32) -> (i32, i32) {
    %c0_i32 = arith.constant 0 : i32
    %c0_i32_0 = arith.constant 0 : i32
    %c0_i32_1 = arith.constant 0 : i32
    return %c0_i32, %c0_i32_0 : i32, i32
  }
  func.func @transform_3(%arg0: i32) -> (i32, i32) {
    %c0_i32 = arith.constant 0 : i32
    %c0_i32_0 = arith.constant 0 : i32
    return %arg0, %c0_i32 : i32, i32
  }
}

</mosaic_0001>

<llo_original>
// kernel: tpu_custom_call.1
$region0: #{tpu_custom_call.1}
  #allocation0 [shape = 'u32[]', space=smem, size = 0x4, offset = 0x4, fixed_abs, tag = 'smem constant byte address 0x4 - core index']
  #allocation1 [shape = 'u32[144,128]{1,0:T(1,128)}', space=vmem, size = 0x12000, scoped, tag = 'internal scratch']
  %s0 = inlined_call_operand.hbm [shape: f32[8,32], index: 0, kind: input, shape index: {}]
  %s1 = inlined_call_operand.hbm [shape: f32[32,128], index: 1, kind: input, shape index: {}]
  %s2 = inlined_call_operand.vmem [shape: f32[1,128], index: 2, kind: input, shape index: {}]
  %s3 = inlined_call_operand.hbm [shape: f32[8,128], index: 3, kind: output, shape index: {}]
  %s4 = sld [smem:[#allocation0]]
  $region30: #{tpu_custom_call.1} parent=0
    _
  %s6 = ssub.s32 1, %s4
  %s7 = scalar_select 0, %s6, %s4
  $region1: #{tpu_custom_call.1} parent=0
    #allocation2 [shape = 'u8[4096]{0}', space=vmem, size = 0x1000, scoped, tag = 'input window, operand 0, single buffered']
    #allocation3 [shape = 's32[1]{0}', space=sflag, size = 0x4, scoped, tag = 'scoped memory for tpu_custom_call.1']
    #allocation4 [shape = 's32[1]{0}', space=sflag, size = 0x4, scoped, tag = 'scoped memory for tpu_custom_call.1']
    #allocation5 [shape = 'u8[16384]{0}', space=vmem, size = 0x4000, scoped, tag = 'input window, operand 1, single buffered']
    #allocation6 [shape = 's32[1]{0}', space=sflag, size = 0x4, scoped, tag = 'scoped memory for tpu_custom_call.1']
    #allocation7 [shape = 'u8[4096]{0}', space=vmem, size = 0x1000, scoped, tag = 'output window, operand 0, single buffered']
    %8 = vsyncpa [#allocation3], 0
    %9 = vsyncpa [#allocation6], 0
    %10 = vsyncpa [#allocation4], 0
    // Predicated region
    $region2: #{tpu_custom_call.1} parent=1 // pred_check
      _
    $region3: #{tpu_custom_call.1} parent=1 // pred_check_branch
      %12 = sbr.rel (0) target = $region5
    $region4: #{tpu_custom_call.1} parent=1 // pred_region
      %s14 = ssub.s32 128, 128
      %15 = vsyncadd [#allocation3], %s14
      %s17 = sshll.u32 [#allocation2], 4
      %s18 = int_to_ptr.vmem [resolvable:$true] %s17
      %20 = dma.hbm_to_vmem [thread:$0]  %s0, 128, %s18, [#allocation3]
    $region5: #{tpu_custom_call.1} parent=1 // pred_fallthru
      _
    // Predicated region
    $region6: #{tpu_custom_call.1} parent=1 // pred_check
      _
    $region7: #{tpu_custom_call.1} parent=1 // pred_check_branch
      %22 = sbr.rel (0) target = $region9
    $region8: #{tpu_custom_call.1} parent=1 // pred_region
      %s24 = ssub.s32 512, 512
      %25 = vsyncadd [#allocation6], %s24
      %s26 = sshll.u32 [#allocation5], 4
      %s27 = int_to_ptr.vmem [resolvable:$true] %s26
      %32 = dma.hbm_to_vmem [thread:$0]  %s1, 512, %s27, [#allocation6], 128, 128, 8
    $region9: #{tpu_custom_call.1} parent=1 // pred_fallthru
      _
    // Predicated region
    $region10: #{tpu_custom_call.1} parent=1 // pred_check
      _
    $region11: #{tpu_custom_call.1} parent=1 // pred_check_branch
      %34 = sbr.rel (0) target = $region13
    $region12: #{tpu_custom_call.1} parent=1 // pred_region
      _
    $region13: #{tpu_custom_call.1} parent=1 // pred_fallthru
      _
    // Predicated region
    $region14: #{tpu_custom_call.1} parent=1 // pred_check
      _
    $region15: #{tpu_custom_call.1} parent=1 // pred_check_branch
      %36 = sbr.rel (0) target = $region17
    $region16: #{tpu_custom_call.1} parent=1 // pred_region
      %37 = dma.done [#allocation3], 128
    $region17: #{tpu_custom_call.1} parent=1 // pred_fallthru
      _
    // Predicated region
    $region18: #{tpu_custom_call.1} parent=1 // pred_check
      _
    $region19: #{tpu_custom_call.1} parent=1 // pred_check_branch
      %39 = sbr.rel (0) target = $region21
    $region20: #{tpu_custom_call.1} parent=1 // pred_region
      %40 = dma.done [#allocation6], 512
    $region21: #{tpu_custom_call.1} parent=1 // pred_fallthru
      _
    %v41 = vld [vmem:[#allocation2] sm:$0xff]
    %v42 = vld [vmem:[#allocation5] sm:$0xff]
    %v43 = vld [vmem:[#allocation5 + $0x8] sm:$0xff]
    %v44 = vld [vmem:[#allocation5 + $0x10] sm:$0xff]
    %v45 = vld [vmem:[#allocation5 + $0x18] sm:$0xff]
    %v46 = vld [vmem:[%s2] sm:$0x1]
    %v48 = vlaneseq
    %v49 = vshrl.u32 %v48, 7
    %v50 = vsub.s32 0, %v49
    %v51 = vrot.slane %v46, %v50
    %vm53 = vcmask 261120
    %v55 = vsel %vm53, %v41, 0
    %57 = vmatprep.subr.mxu0 0.0
    %58 = vmatpush1.msra.mxu0 %v42
    %59 = vmatprep.subr.mxu0 0.0
    %60 = vmatpush1.msra.mxu0 %v43
    %61 = vmatprep.subr.mxu0 0.0
    %62 = vmatpush1.msra.mxu0 %v44
    %63 = vmatprep.subr.mxu0 0.0
    %64 = vmatpush1.msra.mxu0 %v45
    %65 = vmatprep.subr.mxu0 0.0
    %66 = vmatpush1.msra.mxu0 0.0
    %67 = vmatprep.subr.mxu0 0.0
    %68 = vmatpush1.msra.mxu0 0.0
    %69 = vmatprep.subr.mxu0 0.0
    %70 = vmatpush1.msra.mxu0 0.0
    %71 = vmatprep.subr.mxu0 0.0
    %72 = vmatpush1.msra.mxu0 0.0
    %73 = vmatprep.subr.mxu0 0.0
    %74 = vmatpush1.msra.mxu0 0.0
    %75 = vmatprep.subr.mxu0 0.0
    %76 = vmatpush1.msra.mxu0 0.0
    %77 = vmatprep.subr.mxu0 0.0
    %78 = vmatpush1.msra.mxu0 0.0
    %79 = vmatprep.subr.mxu0 0.0
    %80 = vmatpush1.msra.mxu0 0.0
    %81 = vmatprep.subr.mxu0 0.0
    %82 = vmatpush1.msra.mxu0 0.0
    %83 = vmatprep.subr.mxu0 0.0
    %84 = vmatpush1.msra.mxu0 0.0
    %85 = vmatprep.subr.mxu0 0.0
    %86 = vmatpush1.msra.mxu0 0.0
    %87 = vmatprep.subr.mxu0 0.0
    %88 = vmatpush1.msra.mxu0 0.0
    %89 = vmatprep.subr.mxu0 0.0
    %90 = vmatpush1.msra.mxu0 0.0
    %91 = vmatprep.subr.mxu0 0.0
    %92 = vmatpush1.msra.mxu0 0.0
    %93 = vmatprep.subr.mxu0 0.0
    %94 = vmatpush1.msra.mxu0 0.0
    %95 = vmatprep.subr.mxu0 0.0
    %96 = vmatpush1.msra.mxu0 0.0
    %97 = vmatprep.subr.mxu0 0.0
    %98 = vmatpush1.msra.mxu0 0.0
    %99 = vmatprep.subr.mxu0 0.0
    %100 = vmatpush1.msra.mxu0 0.0
    %101 = vmatprep.subr.mxu0 0.0
    %102 = vmatpush1.msra.mxu0 0.0
    %103 = vmatprep.subr.mxu0 0.0
    %104 = vmatpush1.msra.mxu0 0.0
    %105 = vmatprep.subr.mxu0 0.0
    %106 = vmatpush1.msra.mxu0 0.0
    %107 = vmatprep.subr.mxu0 0.0
    %108 = vmatpush1.msra.mxu0 0.0
    %109 = vmatprep.subr.mxu0 0.0
    %110 = vmatpush1.msra.mxu0 0.0
    %111 = vmatprep.subr.mxu0 0.0
    %112 = vmatpush1.msra.mxu0 0.0
    %113 = vmatprep.subr.mxu0 0.0
    %114 = vmatpush1.msra.mxu0 0.0
    %115 = vmatprep.subr.mxu0 0.0
    %116 = vmatpush1.msra.mxu0 0.0
    %117 = vmatprep.subr.mxu0 0.0
    %118 = vmatpush1.msra.mxu0 0.0
    %119 = vmatprep.subr.mxu0 0.0
    %120 = vmatpush1.msra.mxu0 0.0
    %121 = vmatprep.mubr.f32.mxu0 0.0
    %122 = vmatmul.mubr.f32.gmra.mrb[0].mxu0 %v55
    %v123 = vpop.f32.mrb[0].mxu0
    %v124 = vadd.f32 %v51, %v123
    %v125 = vpop.f32.mrb[0].mxu0
    %126 = vdwg.mxu0
    %v127 = vmin.f32 %v124, 20.0
    %vm128 = vcmp.gt.f32.partialorder %v124, 20.0
    %v129 = vmul.f32 %v127, 1.442695
    %v130 = vpow.pop %v129
    %v131 = vadd.f32 %v130, 1.0
    %v132 = vlog2.pop %v131
    %v133 = vmul.f32 %v132, 0.6931472
    %v134 = vmul.f32 -0.5, %v130
    %v135 = vadd.f32 %v134, 1.0
    %v136 = vmul.f32 %v135, %v130
    %v137 = vand.u32 2147483647, %v130
    %vm138 = vcmp.lt.f32.partialorder %v137, 0.0004427343
    %v139 = vsel %vm138, %v136, %v133
    %v140 = vsel %vm128, %v124, %v139
    %v141 = vlaneseq
    %v142 = vand.u32 %v141, 127
    %vm143 = vcmp.ge.s32.totalorder %v142, 16
    %vm144 = vcmp.lt.s32.totalorder %v142, 32
    %vm145 = vmand %vm143, %vm144
    %v146 = vsel %vm145, %v140, %v124
    %147 = vst [vmem:[#allocation7] sm:$0xff] %v146
    // Predicated region
    $region22: #{tpu_custom_call.1} parent=1 // pred_check
      _
    $region23: #{tpu_custom_call.1} parent=1 // pred_check_branch
      %149 = sbr.rel (0) target = $region25
    $region24: #{tpu_custom_call.1} parent=1 // pred_region
      %s151 = ssub.s32 128, 128
      %152 = vsyncadd [#allocation4], %s151
      %s154 = sshll.u32 [#allocation7], 4
      %s155 = int_to_ptr.vmem [resolvable:$true] %s154
      %157 = dma.vmem_to_hbm [thread:$0]  %s155, 128, %s3, [#allocation4]
    $region25: #{tpu_custom_call.1} parent=1 // pred_fallthru
      _
    // Predicated region
    $region26: #{tpu_custom_call.1} parent=1 // pred_check
      _
    $region27: #{tpu_custom_call.1} parent=1 // pred_check_branch
      %159 = sbr.rel (0) target = $region29
    $region28: #{tpu_custom_call.1} parent=1 // pred_region
      %160 = dma.done [#allocation4], 128
    $region29: #{tpu_custom_call.1} parent=1 // pred_fallthru
      _
    %161 = vsyncpa [#allocation3], 1
    %162 = vsyncpa [#allocation6], 1
    %163 = vsyncpa [#allocation4], 1

</llo_original>
